<compile_context>
chip_gen: v6e
topology: v6e:2x2x1
jax: 0.10.0
libtpu: 0.0.40
codegen_flags: <defaults>
</compile_context>

<pallas_src>
import functools

import jax
import jax.numpy as jnp
from jax.experimental import pallas as pl
from jax.experimental.pallas import tpu as pltpu


def _round_up(n, m):
    return ((n + m - 1) // m) * m


def _cdiv(a, b):
    return -(-a // b)


# --------------------------------------------------------------------------- #
# Hardware / feature introspection (cached, never masks real kernel errors).
# --------------------------------------------------------------------------- #
@functools.lru_cache(maxsize=None)
def _hw_info():
    """Returns (per-core VMEM budget in bytes, #TensorCores per chip)."""
    vmem_cap = 64 << 20  # conservative fallback, safe on every generation
    try:
        vmem_cap = int(pltpu.get_tpu_info().vmem_capacity_bytes)
    except Exception:
        pass
    try:
        kind = jax.devices()[0].device_kind.lower()
    except Exception:
        kind = ""
    num_tc = 2 if ("v7" in kind or "7x" in kind) else 1
    if num_tc >= 2:
        # 64 MiB is the true per-TensorCore ceiling on v7x.
        vmem_cap = min(vmem_cap, 64 << 20)
    return int(vmem_cap * 0.85), num_tc


@functools.lru_cache(maxsize=None)
def _single_buffered_weights_supported():
    """One-time tiny compile probe: does this jax/libtpu accept
    pipeline_mode=pl.Buffered(1) on a constant-index BlockSpec?"""
    if not hasattr(pl, "Buffered"):
        return False
    try:
        const_spec = pl.BlockSpec((8, 128), lambda i: (0, 0),
                                  pipeline_mode=pl.Buffered(1))

        def _copy(x_ref, o_ref):
            o_ref[...] = x_ref[...]

        fn = pl.pallas_call(
            _copy,
            out_shape=jax.ShapeDtypeStruct((16, 128), jnp.float32),
            grid=(2,),
            in_specs=[const_spec],
            out_specs=pl.BlockSpec((8, 128), lambda i: (i, 0)),
        )
        jax.block_until_ready(fn(jnp.zeros((8, 128), jnp.float32)))
        return True
    except Exception:
        # Capability probe only; the real kernel path never swallows errors.
        return False


# --------------------------------------------------------------------------- #
# Kernel
# --------------------------------------------------------------------------- #
def _mlp3_kernel(x_ref, w1_ref, b1_ref, w2_ref, b2_ref, w3_ref, b3_ref, o_ref):
    """Fused Linear->ReLU->Linear->ReLU->Linear on one batch tile."""
    cdt = w1_ref.dtype  # MXU input dtype (bf16 or f32); accumulation is f32.

    h = jnp.dot(x_ref[...], w1_ref[...], preferred_element_type=jnp.float32)
    h = jnp.maximum(h + b1_ref[...], 0.0)

    h = jnp.dot(h.astype(cdt), w2_ref[...], preferred_element_type=jnp.float32)
    h = jnp.maximum(h + b2_ref[...], 0.0)

    h = jnp.dot(h.astype(cdt), w3_ref[...], preferred_element_type=jnp.float32)
    o_ref[...] = (h + b3_ref[...]).astype(o_ref.dtype)


@functools.lru_cache(maxsize=None)
def _build_call(B_pad, D_pad, tile_b, mxu_dtype_name, out_dtype_name,
                single_buffer_weights, vmem_limit):
    mxu_dtype = jnp.dtype(mxu_dtype_name)
    out_dtype = jnp.dtype(out_dtype_name)

    const_kwargs = {}
    if single_buffer_weights:
        # Constant index_map + single buffering -> weights resident once in VMEM.
        const_kwargs["pipeline_mode"] = pl.Buffered(1)

    w_spec = pl.BlockSpec((D_pad, D_pad), lambda i: (0, 0), **const_kwargs)
    b_spec = pl.BlockSpec((1, D_pad), lambda i: (0, 0), **const_kwargs)

    x_item = mxu_dtype.itemsize
    o_item = out_dtype.itemsize
    flops = 2 * 3 * B_pad * D_pad * D_pad
    bytes_accessed = int(B_pad * D_pad * (x_item + o_item)
                         + 3 * D_pad * D_pad * x_item + 3 * D_pad * 4)

    return pl.pallas_call(
        _mlp3_kernel,
        out_shape=jax.ShapeDtypeStruct((B_pad, D_pad), out_dtype),
        grid_spec=pltpu.PrefetchScalarGridSpec(
            num_scalar_prefetch=0,
            grid=(B_pad // tile_b,),
            in_specs=[
                pl.BlockSpec((tile_b, D_pad), lambda i: (i, 0)),  # x tile
                w_spec, b_spec,                                   # layer 1
                w_spec, b_spec,                                   # layer 2
                w_spec, b_spec,                                   # layer 3
            ],
            out_specs=pl.BlockSpec((tile_b, D_pad), lambda i: (i, 0)),
        ),
        compiler_params=pltpu.CompilerParams(
            dimension_semantics=("parallel",),
            vmem_limit_bytes=int(vmem_limit),
        ),
        cost_estimate=pl.CostEstimate(
            flops=flops, transcendentals=0, bytes_accessed=bytes_accessed),
    )


# --------------------------------------------------------------------------- #
# Tiling heuristics
# --------------------------------------------------------------------------- #
def _max_tile_rows(D_pad, mxu_item, out_item, vmem_budget, single_buffer_weights):
    """Largest batch-tile row count that fits the VMEM budget."""
    w_copies = 1 if single_buffer_weights else 2
    fixed = 3 * D_pad * D_pad * mxu_item * w_copies + 3 * D_pad * 4 * w_copies
    # Per batch row: double-buffered x + out tiles, plus ~3 f32 intermediates
    # of compiler scratch headroom.
    per_row = D_pad * (2 * mxu_item + 2 * out_item + 3 * 4)
    avail = vmem_budget - fixed
    if avail < 16 * per_row:
        # TODO(synk): switch to a K/N-tiled weight reduction here instead of
        # forcing a minimal tile when the resident weights exhaust VMEM.
        avail = 16 * per_row
    return max(16, int(avail // per_row) // 16 * 16)


def _choose_tile_b(B, max_rows, num_tc):
    """Batch tile: multiple of 16, <= max_rows.  Dual-TC chips get an even
    number of grid steps, and only split when each tile keeps >= 256 rows."""
    b16 = _round_up(max(B, 1), 16)
    max_rows = max(16, min(int(max_rows), 4096))
    steps = _cdiv(b16, max_rows)
    if num_tc >= 2 and b16 >= 2 * 256:
        steps = max(steps, 2)          # at least one tile per TensorCore
        if steps % 2:
            steps += 1                 # even step count keeps both TCs busy
    return _round_up(_cdiv(b16, steps), 16)


# --------------------------------------------------------------------------- #
# Parameter preparation (do once, reuse across forward calls)
# --------------------------------------------------------------------------- #
def prepare_params(params, *, mxu_dtype=jnp.bfloat16):
    """Pad weights to (D_pad, D_pad) in the MXU dtype and biases to (1, D_pad)
    float32.  Call ONCE and reuse the result: the forward detects prepared
    params and skips all per-call weight padding/casting HBM traffic."""
    mxu_dtype = jnp.dtype(mxu_dtype)
    D = jnp.asarray(params["w1"]).shape[0]
    D_pad = max(128, _round_up(D, 128))

    def pad_w(w):
        w = jnp.asarray(w, mxu_dtype)
        return jnp.pad(w, ((0, D_pad - w.shape[0]), (0, D_pad - w.shape[1])))

    def pad_b(b):
        b = jnp.asarray(b, jnp.float32).reshape(1, -1)
        return jnp.pad(b, ((0, 0), (0, D_pad - b.shape[1])))

    return {
        "w1": pad_w(params["w1"]), "b1": pad_b(params["b1"]),
        "w2": pad_w(params["w2"]), "b2": pad_b(params["b2"]),
        "w3": pad_w(params["w3"]), "b3": pad_b(params["b3"]),
    }


def _is_prepared(params, D_pad, mxu_dtype):
    w1 = jnp.asarray(params["w1"])
    b1 = jnp.asarray(params["b1"])
    return (tuple(w1.shape) == (D_pad, D_pad)
            and w1.dtype == jnp.dtype(mxu_dtype)
            and tuple(b1.shape) == (1, D_pad)
            and b1.dtype == jnp.dtype(jnp.float32))


# --------------------------------------------------------------------------- #
# Forward
# --------------------------------------------------------------------------- #
def identical_mlp_backbone(x, params, *, mxu_dtype=jnp.bfloat16):
    """Forward pass of IdenticalMLPBackbone.

    x: [..., D] float array.
    params: dict with w1,b1,w2,b2,w3,b3.  wK: [D, D] stored as (in, out), i.e.
            the PyTorch weight transposed; bK: [1, D] (or [D]).  Prefer passing
            the output of prepare_params() so weights are padded/cast only once.

    Default mxu_dtype=bfloat16 casts x and the weights before each matmul with
    f32 accumulation; pass mxu_dtype=jnp.float32 for exact f32 parity with the
    PyTorch module.
    """
    mxu_dtype = jnp.dtype(mxu_dtype)
    orig_shape = x.shape
    D = orig_shape[-1]
    x2 = x.reshape(-1, D)
    B = x2.shape[0]

    D_pad = max(128, _round_up(D, 128))          # lane-dense feature axis
    if not _is_prepared(params, D_pad, mxu_dtype):
        params = prepare_params(params, mxu_dtype=mxu_dtype)

    out_dtype = jnp.dtype(x.dtype)
    vmem_budget, num_tc = _hw_info()
    single_buf = _single_buffered_weights_supported()

    max_rows = _max_tile_rows(D_pad, mxu_dtype.itemsize, out_dtype.itemsize,
                              vmem_budget, single_buf)
    tile_b = _choose_tile_b(B, max_rows, num_tc)
    B_pad = _round_up(B, tile_b)

    xp = jnp.pad(x2.astype(mxu_dtype), ((0, B_pad - B), (0, D_pad - D)))

    call = _build_call(B_pad, D_pad, tile_b, mxu_dtype.name, out_dtype.name,
                       single_buf, vmem_budget)
    out = call(xp, params["w1"], params["b1"], params["w2"], params["b2"],
               params["w3"], params["b3"])
    return out[:B, :D].reshape(orig_shape)


# --------------------------------------------------------------------------- #
# Reference + demo
# --------------------------------------------------------------------------- #
def init_params(key, input_size):
    """Deterministic init matching nn.Linear's U(-1/sqrt(fan_in), 1/sqrt(fan_in))."""
    keys = jax.random.split(key, 6)
    bound = 1.0 / jnp.sqrt(jnp.float32(input_size))

    def u(k, shape):
        return jax.random.uniform(k, shape, jnp.float32, -bound, bound)

    # Weights stored as (in, out) == W.T relative to PyTorch's (out, in).
    return {
        "w1": u(keys[0], (input_size, input_size)),
        "b1": u(keys[1], (1, input_size)),
        "w2": u(keys[2], (input_size, input_size)),
        "b2": u(keys[3], (1, input_size)),
        "w3": u(keys[4], (input_size, input_size)),
        "b3": u(keys[5], (1, input_size)),
    }


def reference_forward(x, p):
    h1 = jnp.maximum(x @ p["w1"] + p["b1"], 0.0)
    h2 = jnp.maximum(h1 @ p["w2"] + p["b2"], 0.0)
    return h2 @ p["w3"] + p["b3"]


if __name__ == "__main__":
    key = jax.random.PRNGKey(0)
    k_x, k_p = jax.random.split(key)

    batch = 16
    input_size = 32  # backbone_embedding_size == input_size for this identity MLP

    x = jax.random.normal(k_x, (batch, input_size), dtype=jnp.float32)
    params = init_params(k_p, input_size)
    ref = reference_forward(x, params)

    # Exact f32 path (tight parity with PyTorch f32 semantics). Weights are
    # padded/cast once via prepare_params and reused.
    prep_f32 = prepare_params(params, mxu_dtype=jnp.float32)
    out_f32 = jax.block_until_ready(
        identical_mlp_backbone(x, prep_f32, mxu_dtype=jnp.float32))
    assert out_f32.shape == (batch, input_size)
    assert jnp.allclose(out_f32, ref, atol=1e-5, rtol=1e-5), "f32 mismatch vs reference"

    # Default fast path: bf16 MXU inputs, f32 accumulation.
    prep_bf16 = prepare_params(params, mxu_dtype=jnp.bfloat16)
    out_bf16 = jax.block_until_ready(identical_mlp_backbone(x, prep_bf16))
    assert out_bf16.shape == (batch, input_size)
    assert jnp.allclose(out_bf16, ref, atol=5e-2, rtol=5e-2), "bf16 mismatch vs reference"

    print("KERNEL_OK")
</pallas_src>

<mosaic_0001>
module attributes {stable_mosaic.version = 11 : i64} {
  func.func @_copy(%arg0: i32, %arg1: memref<8x128xf32, #tpu.memory_space<vmem>>, %arg2: memref<8x128xf32, #tpu.memory_space<vmem>>) attributes {dimension_semantics = [#tpu.dimension_semantics<arbitrary>], iteration_bounds = array<i64: 2>, scalar_prefetch = 0 : i64, scratch_operands = 0 : i64, tpu.core_type = #tpu.core_type<tc>, window_params = [{pipeline_mode = #tpu.pipeline_mode<synchronous>, transform_indices = @transform_0, window_bounds = array<i64: 8, 128>}, {transform_indices = @transform_1, window_bounds = array<i64: 8, 128>}]} {
    %c0 = arith.constant 0 : index
    %c0_0 = arith.constant 0 : index
    %0 = vector.load %arg1[%c0, %c0_0] : memref<8x128xf32, #tpu.memory_space<vmem>>, vector<8x128xf32>
    %c0_1 = arith.constant 0 : index
    %c0_2 = arith.constant 0 : index
    %1 = vector.load %arg2[%c0_1, %c0_2] : memref<8x128xf32, #tpu.memory_space<vmem>>, vector<8x128xf32>
    tpu.vector_store %arg2[%c0_1, %c0_2], %0 {strides = array<i32>} : memref<8x128xf32, #tpu.memory_space<vmem>>, vector<8x128xf32>,
    return
  }
  func.func @transform_0(%arg0: i32) -> (i32, i32) {
    %c0_i32 = arith.constant 0 : i32
    %c0_i32_0 = arith.constant 0 : i32
    %c0_i32_1 = arith.constant 0 : i32
    return %c0_i32, %c0_i32_0 : i32, i32
  }
  func.func @transform_1(%arg0: i32) -> (i32, i32) {
    %c0_i32 = arith.constant 0 : i32
    %c0_i32_0 = arith.constant 0 : i32
    return %arg0, %c0_i32 : i32, i32
  }
}

module attributes {stable_mosaic.version = 11 : i64} {
  func.func @_mlp3_kernel(%arg0: i32, %arg1: memref<16x128xf32, #tpu.memory_space<vmem>>, %arg2: memref<128x128xf32, #tpu.memory_space<vmem>>, %arg3: memref<1x128xf32, #tpu.memory_space<vmem>>, %arg4: memref<128x128xf32, #tpu.memory_space<vmem>>, %arg5: memref<1x128xf32, #tpu.memory_space<vmem>>, %arg6: memref<128x128xf32, #tpu.memory_space<vmem>>, %arg7: memref<1x128xf32, #tpu.memory_space<vmem>>, %arg8: memref<16x128xf32, #tpu.memory_space<vmem>>) attributes {dimension_semantics = [#tpu.dimension_semantics<parallel>], iteration_bounds = array<i64: 1>, scalar_prefetch = 0 : i64, scratch_operands = 0 : i64, tpu.core_type = #tpu.core_type<tc>, window_params = [{transform_indices = @transform_0, window_bounds = array<i64: 16, 128>}, {pipeline_mode = #tpu.pipeline_mode<synchronous>, transform_indices = @transform_1, window_bounds = array<i64: 128, 128>}, {pipeline_mode = #tpu.pipeline_mode<synchronous>, transform_indices = @transform_2, window_bounds = array<i64: 1, 128>}, {pipeline_mode = #tpu.pipeline_mode<synchronous>, transform_indices = @transform_3, window_bounds = array<i64: 128, 128>}, {pipeline_mode = #tpu.pipeline_mode<synchronous>, transform_indices = @transform_4, window_bounds = array<i64: 1, 128>}, {pipeline_mode = #tpu.pipeline_mode<synchronous>, transform_indices = @transform_5, window_bounds = array<i64: 128, 128>}, {pipeline_mode = #tpu.pipeline_mode<synchronous>, transform_indices = @transform_6, window_bounds = array<i64: 1, 128>}, {transform_indices = @transform_7, window_bounds = array<i64: 16, 128>}]} {
    %c0 = arith.constant 0 : index
    %c0_0 = arith.constant 0 : index
    %0 = vector.load %arg1[%c0, %c0_0] : memref<16x128xf32, #tpu.memory_space<vmem>>, vector<16x128xf32>
    %c0_1 = arith.constant 0 : index
    %c0_2 = arith.constant 0 : index
    %1 = vector.load %arg2[%c0_1, %c0_2] : memref<128x128xf32, #tpu.memory_space<vmem>>, vector<128x128xf32>
    %cst = arith.constant dense<0.000000e+00> : vector<16x128xf32>
    %2 = tpu.matmul %0, %1, %cst {dimension_numbers = #tpu.dot_dimension_numbers<[1], [0], [0], [1], [0, 0, 1, 1], [], []>} : vector<16x128xf32>, vector<128x128xf32>, vector<16x128xf32> -> vector<16x128xf32>
    %c0_3 = arith.constant 0 : index
    %c0_4 = arith.constant 0 : index
    %3 = vector.load %arg3[%c0_3, %c0_4] : memref<1x128xf32, #tpu.memory_space<vmem>>, vector<1x128xf32>
    %4 = vector.broadcast %3 : vector<1x128xf32> to vector<16x128xf32>
    %5 = arith.addf %2, %4 : vector<16x128xf32>
    %cst_5 = arith.constant 0.000000e+00 : f32
    %6 = vector.broadcast %cst_5 : f32 to vector<16x128xf32>
    %7 = arith.maximumf %5, %6 : vector<16x128xf32>
    %c0_6 = arith.constant 0 : index
    %c0_7 = arith.constant 0 : index
    %8 = vector.load %arg4[%c0_6, %c0_7] : memref<128x128xf32, #tpu.memory_space<vmem>>, vector<128x128xf32>
    %cst_8 = arith.constant dense<0.000000e+00> : vector<16x128xf32>
    %9 = tpu.matmul %7, %8, %cst_8 {dimension_numbers = #tpu.dot_dimension_numbers<[1], [0], [0], [1], [0, 0, 1, 1], [], []>} : vector<16x128xf32>, vector<128x128xf32>, vector<16x128xf32> -> vector<16x128xf32>
    %c0_9 = arith.constant 0 : index
    %c0_10 = arith.constant 0 : index
    %10 = vector.load %arg5[%c0_9, %c0_10] : memref<1x128xf32, #tpu.memory_space<vmem>>, vector<1x128xf32>
    %11 = vector.broadcast %10 : vector<1x128xf32> to vector<16x128xf32>
    %12 = arith.addf %9, %11 : vector<16x128xf32>
    %cst_11 = arith.constant 0.000000e+00 : f32
    %13 = vector.broadcast %cst_11 : f32 to vector<16x128xf32>
    %14 = arith.maximumf %12, %13 : vector<16x128xf32>
    %c0_12 = arith.constant 0 : index
    %c0_13 = arith.constant 0 : index
    %15 = vector.load %arg6[%c0_12, %c0_13] : memref<128x128xf32, #tpu.memory_space<vmem>>, vector<128x128xf32>
    %cst_14 = arith.constant dense<0.000000e+00> : vector<16x128xf32>
    %16 = tpu.matmul %14, %15, %cst_14 {dimension_numbers = #tpu.dot_dimension_numbers<[1], [0], [0], [1], [0, 0, 1, 1], [], []>} : vector<16x128xf32>, vector<128x128xf32>, vector<16x128xf32> -> vector<16x128xf32>
    %c0_15 = arith.constant 0 : index
    %c0_16 = arith.constant 0 : index
    %17 = vector.load %arg7[%c0_15, %c0_16] : memref<1x128xf32, #tpu.memory_space<vmem>>, vector<1x128xf32>
    %18 = vector.broadcast %17 : vector<1x128xf32> to vector<16x128xf32>
    %19 = arith.addf %16, %18 : vector<16x128xf32>
    %c0_17 = arith.constant 0 : index
    %c0_18 = arith.constant 0 : index
    %20 = vector.load %arg8[%c0_17, %c0_18] : memref<16x128xf32, #tpu.memory_space<vmem>>, vector<16x128xf32>
    tpu.vector_store %arg8[%c0_17, %c0_18], %19 {strides = array<i32>} : memref<16x128xf32, #tpu.memory_space<vmem>>, vector<16x128xf32>,
    return
  }
  func.func @transform_0(%arg0: i32) -> (i32, i32) {
    %c0_i32 = arith.constant 0 : i32
    %c0_i32_0 = arith.constant 0 : i32
    return %arg0, %c0_i32 : i32, i32
  }
  func.func @transform_1(%arg0: i32) -> (i32, i32) {
    %c0_i32 = arith.constant 0 : i32
    %c0_i32_0 = arith.constant 0 : i32
    %c0_i32_1 = arith.constant 0 : i32
    return %c0_i32, %c0_i32_0 : i32, i32
  }
  func.func @transform_2(%arg0: i32) -> (i32, i32) {
    %c0_i32 = arith.constant 0 : i32
    %c0_i32_0 = arith.constant 0 : i32
    %c0_i32_1 = arith.constant 0 : i32
    return %c0_i32, %c0_i32_0 : i32, i32
  }
  func.func @transform_3(%arg0: i32) -> (i32, i32) {
    %c0_i32 = arith.constant 0 : i32
    %c0_i32_0 = arith.constant 0 : i32
    %c0_i32_1 = arith.constant 0 : i32
    return %c0_i32, %c0_i32_0 : i32, i32
  }
  func.func @transform_4(%arg0: i32) -> (i32, i32) {
    %c0_i32 = arith.constant 0 : i32
    %c0_i32_0 = arith.constant 0 : i32
    %c0_i32_1 = arith.constant 0 : i32
    return %c0_i32, %c0_i32_0 : i32, i32
  }
  func.func @transform_5(%arg0: i32) -> (i32, i32) {
    %c0_i32 = arith.constant 0 : i32
    %c0_i32_0 = arith.constant 0 : i32
    %c0_i32_1 = arith.constant 0 : i32
    return %c0_i32, %c0_i32_0 : i32, i32
  }
  func.func @transform_6(%arg0: i32) -> (i32, i32) {
    %c0_i32 = arith.constant 0 : i32
    %c0_i32_0 = arith.constant 0 : i32
    %c0_i32_1 = arith.constant 0 : i32
    return %c0_i32, %c0_i32_0 : i32, i32
  }
  func.func @transform_7(%arg0: i32) -> (i32, i32) {
    %c0_i32 = arith.constant 0 : i32
    %c0_i32_0 = arith.constant 0 : i32
    return %arg0, %c0_i32 : i32, i32
  }
}

</mosaic_0001>

<llo_original>
// kernel: tpu_custom_call.1
$region0: #{tpu_custom_call.1}
  #allocation0 [shape = 'u32[]', space=smem, size = 0x4, offset = 0x4, fixed_abs, tag = 'smem constant byte address 0x4 - core index']
  #allocation1 [shape = 'u32[144,128]{1,0:T(1,128)}', space=vmem, size = 0x12000, scoped, tag = 'internal scratch']
  %s0 = inlined_call_operand.hbm [shape: f32[8,128], index: 0, kind: input, shape index: {}]
  %s1 = inlined_call_operand.hbm [shape: f32[16,128], index: 1, kind: output, shape index: {}]
  %s2 = sld [smem:[#allocation0]]
  $region41: #{tpu_custom_call.1} parent=0
    _
  %s4 = ssub.s32 1, %s2
  %s5 = scalar_select 0, %s4, %s2
  $region1: #{tpu_custom_call.1} parent=0
    #allocation2 [shape = 'u8[4096]{0}', space=vmem, size = 0x1000, scoped, tag = 'input window, operand 0, single buffered']
    #allocation3 [shape = 's32[2]{0}', space=sflag, size = 0x8, scoped, tag = 'scoped memory for tpu_custom_call.1']
    #allocation4 [shape = 's32[2]{0}', space=sflag, size = 0x8, scoped, tag = 'scoped memory for tpu_custom_call.1']
    #allocation5 [shape = 'u8[8192]{0}', space=vmem, size = 0x2000, scoped, tag = 'output window, operand 0']
    %6 = vsyncpa [#allocation3], 0
    %7 = vsyncpa [#allocation4], 0
    %s8 = scalar_lea.sflag [#allocation4], 1
    %9 = vsyncpa %s8, 0
    loop: start=0, step=1, limit=4
    $region2: #{tpu_custom_call.1} parent=1 // loop_pre_header
      _
    $region3: #{tpu_custom_call.1} parent=1 // loop_header
      %s11 = sphi 0, %s15
      %p12 = scmp.ge.s32.totalorder %s11, 4
      %s19 = sphi 0, %s19
      %s21 = sphi 0, %s19
      %s22 = sphi 0, %s21
      %s36 = sphi 0, %s22
      %s42 = sphi 0, %s44
      %s45 = sphi 0, %s42
      %s46 = sphi 0, %s45
      %s62 = sphi 0, %s46
    $region4: #{tpu_custom_call.1} parent=1 // loop_header_branch
      %14 = sbr.rel (%p12) target = $region8
    $region5: #{tpu_custom_call.1} parent=1 // loop_body
      %s16 = ssub.s32 %s11, 1
      %s17 = ssub.s32 %s11, 2
      %s18 = sadd.s32 %s11, 1
      %s20 = sadd.s32 %s19, 1
      %p23 = scmp.eq.s32.totalorder %s11, 1
      %p24 = scmp.ne.s32.totalorder %s19, %s21
      %p25 = scmp.eq.s32.totalorder %s11, 0
      %p26 = por %p24, %p25
      %p27 = scmp.ne.s32.totalorder %s19, %s21
      %p28 = scmp.eq.s32.totalorder %s16, 1
      %p29 = por %p27, %p28
      %p30 = scmp.ne.s32.totalorder %s21, %s22
      %p31 = scmp.eq.s32.totalorder %s16, 0
      %p32 = por %p30, %p31
      %p33 = scmp.ne.s32.totalorder %s21, %s22
      %p34 = scmp.eq.s32.totalorder %s17, 1
      %p35 = por %p33, %p34
      %p37 = scmp.ne.s32.totalorder %s22, %s36
      %p38 = scmp.eq.s32.totalorder %s17, 0
      %p39 = por %p37, %p38
      %s40 = ssub.s32 %s11, %s18
      %p41 = scmp.eq.s32.totalorder %s40, 0
      %s43 = sadd.s32 %s42, 1
      %s44 = scalar_select %p41, %s42, %s43
      %p47 = pneg %p41
      %p48 = scmp.eq.s32.totalorder %s11, 1
      %p49 = por %p47, %p48
      %p50 = scmp.ne.s32.totalorder %s42, %s45
      %p51 = scmp.eq.s32.totalorder %s11, 0
      %p52 = por %p50, %p51
      %p53 = scmp.ne.s32.totalorder %s42, %s45
      %p54 = scmp.eq.s32.totalorder %s16, 1
      %p55 = por %p53, %p54
      %p56 = scmp.ne.s32.totalorder %s45, %s46
      %p57 = scmp.eq.s32.totalorder %s16, 0
      %p58 = por %p56, %p57
      %p59 = scmp.ne.s32.totalorder %s45, %s46
      %p60 = scmp.eq.s32.totalorder %s17, 1
      %p61 = por %p59, %p60
      %p63 = scmp.ne.s32.totalorder %s46, %s62
      %p64 = scmp.eq.s32.totalorder %s17, 0
      %p65 = por %p63, %p64
      %p66 = scmp.le.s32.totalorder 1, %s11
      %p67 = scmp.lt.s32.totalorder %s11, 3
      %p68 = pnand %p66, %p67
      %p69 = pneg %p68
      // Predicated region
      $region9: #{tpu_custom_call.1} parent=5 // pred_check
        _
      $region10: #{tpu_custom_call.1} parent=5 // pred_check_branch
        %71 = sbr.rel (%p68) target = $region12
      $region11: #{tpu_custom_call.1} parent=5 // pred_region
        %s72 = ssub.s32 %s11, 1
        // Predicated region
        $region13: #{tpu_custom_call.1} parent=11 // pred_check
          %p73 = pneg %p32
        $region14: #{tpu_custom_call.1} parent=11 // pred_check_branch
          %75 = sbr.rel (%p73) target = $region16
        $region15: #{tpu_custom_call.1} parent=11 // pred_region
          %s77 = ssub.s32 128, 128
          %78 = vsyncadd [#allocation3], %s77
          %s80 = sshll.u32 [#allocation2], 4
          %s81 = int_to_ptr.vmem [resolvable:$true] %s80
          %83 = dma.hbm_to_vmem [thread:$0]  %s0, 128, %s81, [#allocation3]
        $region16: #{tpu_custom_call.1} parent=11 // pred_fallthru
          _
      $region12: #{tpu_custom_call.1} parent=5 // pred_fallthru
        _
      %p84 = scmp.lt.s32.totalorder %s11, 2
      // Predicated region
      $region17: #{tpu_custom_call.1} parent=5 // pred_check
        %p85 = pneg %p84
      $region18: #{tpu_custom_call.1} parent=5 // pred_check_branch
        %87 = sbr.rel (%p85) target = $region20
      $region19: #{tpu_custom_call.1} parent=5 // pred_region
        _
      $region20: #{tpu_custom_call.1} parent=5 // pred_fallthru
        _
      %p88 = scmp.le.s32.totalorder 1, %s11
      %p89 = scmp.lt.s32.totalorder %s11, 3
      %p90 = pnand %p88, %p89
      %p91 = pneg %p90
      // Predicated region
      $region21: #{tpu_custom_call.1} parent=5 // pred_check
        _
      $region22: #{tpu_custom_call.1} parent=5 // pred_check_branch
        %93 = sbr.rel (%p90) target = $region24
      $region23: #{tpu_custom_call.1} parent=5 // pred_region
        %s94 = ssub.s32 %s11, 1
        // Predicated region
        $region25: #{tpu_custom_call.1} parent=23 // pred_check
          %p95 = pneg %p32
        $region26: #{tpu_custom_call.1} parent=23 // pred_check_branch
          %97 = sbr.rel (%p95) target = $region28
        $region27: #{tpu_custom_call.1} parent=23 // pred_region
          %98 = dma.done [#allocation3], 128
        $region28: #{tpu_custom_call.1} parent=23 // pred_fallthru
          _
        %p99 = pneg %p32
        %p100 = pneg %p29
        %p101 = pneg %p58
        %p102 = pneg %p55
        %s103 = sand.u32 %s45, 1
        %s104 = scalar_lea.sflag [#allocation4], %s103
        %s105 = sand.u32 %s45, 1
        %s106 = smul.addr %s105, 8
        %s107 = scalar_lea.vmem [#allocation5], %s106
        %v108 = vld [vmem:[#allocation2] sm:$0xff]
        %109 = vst [vmem:[%s107] sm:$0xff] %v108
        %s110 = sand.u32 %s45, 1
        %s111 = scalar_lea.sflag [#allocation4], %s110
        %s112 = sand.u32 %s45, 1
        %s113 = smul.addr %s112, 8
        %s114 = scalar_lea.vmem [#allocation5], %s113
        // Predicated region
        $region29: #{tpu_custom_call.1} parent=23 // pred_check
          %p115 = pneg %p55
        $region30: #{tpu_custom_call.1} parent=23 // pred_check_branch
          %117 = sbr.rel (%p115) target = $region32
        $region31: #{tpu_custom_call.1} parent=23 // pred_region
          %s119 = ssub.s32 128, 128
          %120 = vsyncadd %s111, %s119
          %s121 = smul.addr %s16, 128
          %s122 = scalar_lea.hbm %s1, %s121
          %s124 = sshll.u32 %s114, 4
          %s125 = int_to_ptr.vmem [resolvable:$true] %s124
          %127 = dma.vmem_to_hbm [thread:$0]  %s125, 128, %s122, %s111
        $region32: #{tpu_custom_call.1} parent=23 // pred_fallthru
          _
      $region24: #{tpu_custom_call.1} parent=5 // pred_fallthru
        _
      %p128 = scmp.le.s32.totalorder 2, %s11
      // Predicated region
      $region33: #{tpu_custom_call.1} parent=5 // pred_check
        %p129 = pneg %p128
      $region34: #{tpu_custom_call.1} parent=5 // pred_check_branch
        %131 = sbr.rel (%p129) target = $region36
      $region35: #{tpu_custom_call.1} parent=5 // pred_region
        %s132 = ssub.s32 %s11, 2
        // Predicated region
        $region37: #{tpu_custom_call.1} parent=35 // pred_check
          %p133 = pneg %p61
        $region38: #{tpu_custom_call.1} parent=35 // pred_check_branch
          %135 = sbr.rel (%p133) target = $region40
        $region39: #{tpu_custom_call.1} parent=35 // pred_region
          %s136 = sand.u32 %s46, 1
          %s137 = scalar_lea.sflag [#allocation4], %s136
          %s138 = sand.u32 %s46, 1
          %s139 = smul.addr %s138, 8
          %s140 = scalar_lea.vmem [#allocation5], %s139
          %141 = dma.done %s137, 128
        $region40: #{tpu_custom_call.1} parent=35 // pred_fallthru
          _
      $region36: #{tpu_custom_call.1} parent=5 // pred_fallthru
        _
    $region6: #{tpu_custom_call.1} parent=1 // loop_footer
      %s15 = sadd.s32 1, %s11
    $region7: #{tpu_custom_call.1} parent=1 // loop_footer_branch
      %10 = sbr.rel target = $region3
    $region8: #{tpu_custom_call.1} parent=1 // loop_exit
      _
    %142 = vsyncpa [#allocation3], 1
    %s143 = scalar_lea.sflag [#allocation3], 1
    %144 = vsyncpa %s143, 1
    %145 = vsyncpa [#allocation4], 1
    %s146 = scalar_lea.sflag [#allocation4], 1
    %147 = vsyncpa %s146, 1

// kernel: tpu_custom_call.1
$region0: #{tpu_custom_call.1}
  #allocation0 [shape = 'u32[]', space=smem, size = 0x4, offset = 0x4, fixed_abs, tag = 'smem constant byte address 0x4 - core index']
  #allocation1 [shape = 'u32[144,128]{1,0:T(1,128)}', space=vmem, size = 0x12000, scoped, tag = 'internal scratch']
  %s0 = inlined_call_operand.hbm [shape: f32[16,128], index: 0, kind: input, shape index: {}]
  %s1 = inlined_call_operand.hbm [shape: f32[128,128], index: 1, kind: input, shape index: {}]
  %s2 = inlined_call_operand.vmem [shape: f32[1,128], index: 2, kind: input, shape index: {}]
  %s3 = inlined_call_operand.hbm [shape: f32[128,128], index: 3, kind: input, shape index: {}]
  %s4 = inlined_call_operand.vmem [shape: f32[1,128], index: 4, kind: input, shape index: {}]
  %s5 = inlined_call_operand.hbm [shape: f32[128,128], index: 5, kind: input, shape index: {}]
  %s6 = inlined_call_operand.vmem [shape: f32[1,128], index: 6, kind: input, shape index: {}]
  %s7 = inlined_call_operand.hbm [shape: f32[16,128], index: 7, kind: output, shape index: {}]
  %s8 = sld [smem:[#allocation0]]
  $region54: #{tpu_custom_call.1} parent=0
    _
  %s10 = ssub.s32 1, %s8
  %s11 = scalar_select 0, %s10, %s8
  $region1: #{tpu_custom_call.1} parent=0
    #allocation2 [shape = 'u8[8192]{0}', space=vmem, size = 0x2000, scoped, tag = 'input window, operand 0, single buffered']
    #allocation3 [shape = 's32[1]{0}', space=sflag, size = 0x4, scoped, tag = 'scoped memory for tpu_custom_call.1']
    #allocation4 [shape = 's32[1]{0}', space=sflag, size = 0x4, scoped, tag = 'scoped memory for tpu_custom_call.1']
    #allocation5 [shape = 'u8[65536]{0}', space=vmem, size = 0x10000, scoped, tag = 'input window, operand 1, single buffered']
    #allocation6 [shape = 's32[1]{0}', space=sflag, size = 0x4, scoped, tag = 'scoped memory for tpu_custom_call.1']
    #allocation7 [shape = 'u8[65536]{0}', space=vmem, size = 0x10000, scoped, tag = 'input window, operand 3, single buffered']
    #allocation8 [shape = 'u8[65536]{0}', space=vmem, size = 0x10000, scoped, tag = 'input window, operand 5, single buffered']
    #allocation9 [shape = 's32[1]{0}', space=sflag, size = 0x4, scoped, tag = 'scoped memory for tpu_custom_call.1']
    #allocation10 [shape = 'u8[8192]{0}', space=vmem, size = 0x2000, scoped, tag = 'output window, operand 0, single buffered']
    %12 = vsyncpa [#allocation3], 0
    %13 = vsyncpa [#allocation6], 0
    %14 = vsyncpa [#allocation9], 0
    %15 = vsyncpa [#allocation4], 0
    // Predicated region
    $region2: #{tpu_custom_call.1} parent=1 // pred_check
      _
    $region3: #{tpu_custom_call.1} parent=1 // pred_check_branch
      %17 = sbr.rel (0) target = $region5
    $region4: #{tpu_custom_call.1} parent=1 // pred_region
      %s19 = ssub.s32 256, 256
      %20 = vsyncadd [#allocation3], %s19
      %s21 = sshll.u32 [#allocation2], 4
      %s22 = int_to_ptr.vmem [resolvable:$true] %s21
      %27 = dma.hbm_to_vmem [thread:$0]  %s0, 256, %s22, [#allocation3], 128, 128, 8
    $region5: #{tpu_custom_call.1} parent=1 // pred_fallthru
      _
    // Predicated region
    $region6: #{tpu_custom_call.1} parent=1 // pred_check
      _
    $region7: #{tpu_custom_call.1} parent=1 // pred_check_branch
      %29 = sbr.rel (0) target = $region9
    $region8: #{tpu_custom_call.1} parent=1 // pred_region
      %s31 = ssub.s32 2048, 2048
      %32 = vsyncadd [#allocation6], %s31
      %s33 = sshll.u32 [#allocation5], 4
      %s34 = int_to_ptr.vmem [resolvable:$true] %s33
      %39 = dma.hbm_to_vmem [thread:$0]  %s1, 2048, %s34, [#allocation6], 128, 128, 8
    $region9: #{tpu_custom_call.1} parent=1 // pred_fallthru
      _
    // Predicated region
    $region10: #{tpu_custom_call.1} parent=1 // pred_check
      _
    $region11: #{tpu_custom_call.1} parent=1 // pred_check_branch
      %41 = sbr.rel (0) target = $region13
    $region12: #{tpu_custom_call.1} parent=1 // pred_region
      _
    $region13: #{tpu_custom_call.1} parent=1 // pred_fallthru
      _
    // Predicated region
    $region14: #{tpu_custom_call.1} parent=1 // pred_check
      _
    $region15: #{tpu_custom_call.1} parent=1 // pred_check_branch
      %43 = sbr.rel (0) target = $region17
    $region16: #{tpu_custom_call.1} parent=1 // pred_region
      %s45 = ssub.s32 2048, 2048
      %46 = vsyncadd [#allocation6], %s45
      %s47 = sshll.u32 [#allocation7], 4
      %s48 = int_to_ptr.vmem [resolvable:$true] %s47
      %53 = dma.hbm_to_vmem [thread:$0]  %s3, 2048, %s48, [#allocation6], 128, 128, 8
    $region17: #{tpu_custom_call.1} parent=1 // pred_fallthru
      _
    // Predicated region
    $region18: #{tpu_custom_call.1} parent=1 // pred_check
      _
    $region19: #{tpu_custom_call.1} parent=1 // pred_check_branch
      %55 = sbr.rel (0) target = $region21
    $region20: #{tpu_custom_call.1} parent=1 // pred_region
      _
    $region21: #{tpu_custom_call.1} parent=1 // pred_fallthru
      _
    // Predicated region
    $region22: #{tpu_custom_call.1} parent=1 // pred_check
      _
    $region23: #{tpu_custom_call.1} parent=1 // pred_check_branch
      %57 = sbr.rel (0) target = $region25
    $region24: #{tpu_custom_call.1} parent=1 // pred_region
      %s59 = ssub.s32 2048, 2048
      %60 = vsyncadd [#allocation9], %s59
      %s61 = sshll.u32 [#allocation8], 4
      %s62 = int_to_ptr.vmem [resolvable:$true] %s61
      %67 = dma.hbm_to_vmem [thread:$0]  %s5, 2048, %s62, [#allocation9], 128, 128, 8
    $region25: #{tpu_custom_call.1} parent=1 // pred_fallthru
      _
    // Predicated region
    $region26: #{tpu_custom_call.1} parent=1 // pred_check
      _
    $region27: #{tpu_custom_call.1} parent=1 // pred_check_branch
      %69 = sbr.rel (0) target = $region29
    $region28: #{tpu_custom_call.1} parent=1 // pred_region
      _
    $region29: #{tpu_custom_call.1} parent=1 // pred_fallthru
      _
    // Predicated region
    $region30: #{tpu_custom_call.1} parent=1 // pred_check
      _
    $region31: #{tpu_custom_call.1} parent=1 // pred_check_branch
      %71 = sbr.rel (0) target = $region33
    $region32: #{tpu_custom_call.1} parent=1 // pred_region
      %72 = dma.done [#allocation3], 256
    $region33: #{tpu_custom_call.1} parent=1 // pred_fallthru
      _
    // Predicated region
    $region34: #{tpu_custom_call.1} parent=1 // pred_check
      _
    $region35: #{tpu_custom_call.1} parent=1 // pred_check_branch
      %74 = sbr.rel (0) target = $region37
    $region36: #{tpu_custom_call.1} parent=1 // pred_region
      %75 = dma.done [#allocation6], 2048
    $region37: #{tpu_custom_call.1} parent=1 // pred_fallthru
      _
    // Predicated region
    $region38: #{tpu_custom_call.1} parent=1 // pred_check
      _
    $region39: #{tpu_custom_call.1} parent=1 // pred_check_branch
      %77 = sbr.rel (0) target = $region41
    $region40: #{tpu_custom_call.1} parent=1 // pred_region
      %78 = dma.done [#allocation6], 2048
    $region41: #{tpu_custom_call.1} parent=1 // pred_fallthru
      _
    // Predicated region
    $region42: #{tpu_custom_call.1} parent=1 // pred_check
      _
    $region43: #{tpu_custom_call.1} parent=1 // pred_check_branch
      %80 = sbr.rel (0) target = $region45
    $region44: #{tpu_custom_call.1} parent=1 // pred_region
      %81 = dma.done [#allocation9], 2048
    $region45: #{tpu_custom_call.1} parent=1 // pred_fallthru
      _
    %v82 = vld [vmem:[#allocation2] sm:$0xff]
    %v83 = vld [vmem:[#allocation2 + $0x8] sm:$0xff]
    %v84 = vld [vmem:[#allocation5] sm:$0xff]
    %v85 = vld [vmem:[#allocation5 + $0x8] sm:$0xff]
    %v86 = vld [vmem:[#allocation5 + $0x10] sm:$0xff]
    %v87 = vld [vmem:[#allocation5 + $0x18] sm:$0xff]
    %v88 = vld [vmem:[#allocation5 + $0x20] sm:$0xff]
    %v89 = vld [vmem:[#allocation5 + $0x28] sm:$0xff]
    %v90 = vld [vmem:[#allocation5 + $0x30] sm:$0xff]
    %v91 = vld [vmem:[#allocation5 + $0x38] sm:$0xff]
    %v92 = vld [vmem:[#allocation5 + $0x40] sm:$0xff]
    %v93 = vld [vmem:[#allocation5 + $0x48] sm:$0xff]
    %v94 = vld [vmem:[#allocation5 + $0x50] sm:$0xff]
    %v95 = vld [vmem:[#allocation5 + $0x58] sm:$0xff]
    %v96 = vld [vmem:[#allocation5 + $0x60] sm:$0xff]
    %v97 = vld [vmem:[#allocation5 + $0x68] sm:$0xff]
    %v98 = vld [vmem:[#allocation5 + $0x70] sm:$0xff]
    %v99 = vld [vmem:[#allocation5 + $0x78] sm:$0xff]
    %v100 = vld [vmem:[%s2] sm:$0x1]
    %v102 = vlaneseq
    %v103 = vshrl.u32 %v102, 7
    %v104 = vsub.s32 0, %v103
    %v105 = vrot.slane %v100, %v104
    %107 = vmatprep.subr.mxu0 0.0
    %108 = vmatpush1.msra.mxu0 %v99
    %109 = vmatprep.subr.mxu0 0.0
    %110 = vmatpush1.msra.mxu0 %v98
    %111 = vmatprep.subr.mxu0 0.0
    %112 = vmatpush1.msra.mxu0 %v97
    %113 = vmatprep.subr.mxu0 0.0
    %114 = vmatpush1.msra.mxu0 %v96
    %115 = vmatprep.subr.mxu0 0.0
    %116 = vmatpush1.msra.mxu0 %v95
    %117 = vmatprep.subr.mxu0 0.0
    %118 = vmatpush1.msra.mxu0 %v94
    %119 = vmatprep.subr.mxu0 0.0
    %120 = vmatpush1.msra.mxu0 %v93
    %121 = vmatprep.subr.mxu0 0.0
    %122 = vmatpush1.msra.mxu0 %v92
    %123 = vmatprep.subr.mxu0 0.0
    %124 = vmatpush1.msra.mxu0 %v91
    %125 = vmatprep.subr.mxu0 0.0
    %126 = vmatpush1.msra.mxu0 %v90
    %127 = vmatprep.subr.mxu0 0.0
    %128 = vmatpush1.msra.mxu0 %v89
    %129 = vmatprep.subr.mxu0 0.0
    %130 = vmatpush1.msra.mxu0 %v88
    %131 = vmatprep.subr.mxu0 0.0
    %132 = vmatpush1.msra.mxu0 %v87
    %133 = vmatprep.subr.mxu0 0.0
    %134 = vmatpush1.msra.mxu0 %v86
    %135 = vmatprep.subr.mxu0 0.0
    %136 = vmatpush1.msra.mxu0 %v85
    %137 = vmatprep.subr.mxu0 0.0
    %138 = vmatpush1.msra.mxu0 %v84
    %139 = vmatprep.subr.mxu0 0.0
    %140 = vmatpush2.msra.mxu0 0.0
    %141 = vmatprep.subr.mxu0 0.0
    %142 = vmatpush2.msra.mxu0 0.0
    %143 = vmatprep.subr.mxu0 0.0
    %144 = vmatpush2.msra.mxu0 0.0
    %145 = vmatprep.subr.mxu0 0.0
    %146 = vmatpush2.msra.mxu0 0.0
    %147 = vmatprep.subr.mxu0 0.0
    %148 = vmatpush2.msra.mxu0 0.0
    %149 = vmatprep.subr.mxu0 0.0
    %150 = vmatpush2.msra.mxu0 0.0
    %151 = vmatprep.subr.mxu0 0.0
    %152 = vmatpush2.msra.mxu0 0.0
    %153 = vmatprep.subr.mxu0 0.0
    %154 = vmatpush2.msra.mxu0 0.0
    %155 = vmatprep.subr.mxu0 0.0
    %156 = vmatpush2.msra.mxu0 0.0
    %157 = vmatprep.subr.mxu0 0.0
    %158 = vmatpush2.msra.mxu0 0.0
    %159 = vmatprep.subr.mxu0 0.0
    %160 = vmatpush2.msra.mxu0 0.0
    %161 = vmatprep.subr.mxu0 0.0
    %162 = vmatpush2.msra.mxu0 0.0
    %163 = vmatprep.subr.mxu0 0.0
    %164 = vmatpush2.msra.mxu0 0.0
    %165 = vmatprep.subr.mxu0 0.0
    %166 = vmatpush2.msra.mxu0 0.0
    %167 = vmatprep.subr.mxu0 0.0
    %168 = vmatpush2.msra.mxu0 0.0
    %169 = vmatprep.subr.mxu0 0.0
    %170 = vmatpush2.msra.mxu0 0.0
    %171 = vmatprep.mubr.f32.mxu0 0.0
    %172 = vmatmul.mubr.f32.gmra.mxu0 %v82
    %v173 = vpop.f32.mrf.mxu0
    %v174 = vadd.f32 %v105, %v173
    %v175 = vpop.f32.mrf.mxu0
    %176 = vmatprep.mubr.f32.mxu0 0.0
    %177 = vmatmul.mubr.f32.gmra.mxu0 %v83
    %v178 = vpop.f32.mrf.mxu0
    %v179 = vadd.f32 %v105, %v178
    %v180 = vpop.f32.mrf.mxu0
    %181 = vdwg.mxu0
    %v182 = vmax.f32 %v174, 0.0
    %v183 = vmax.f32 %v179, 0.0
    %v184 = vld [vmem:[#allocation7] sm:$0xff]
    %v185 = vld [vmem:[#allocation7 + $0x8] sm:$0xff]
    %v186 = vld [vmem:[#allocation7 + $0x10] sm:$0xff]
    %v187 = vld [vmem:[#allocation7 + $0x18] sm:$0xff]
    %v188 = vld [vmem:[#allocation7 + $0x20] sm:$0xff]
    %v189 = vld [vmem:[#allocation7 + $0x28] sm:$0xff]
    %v190 = vld [vmem:[#allocation7 + $0x30] sm:$0xff]
    %v191 = vld [vmem:[#allocation7 + $0x38] sm:$0xff]
    %v192 = vld [vmem:[#allocation7 + $0x40] sm:$0xff]
    %v193 = vld [vmem:[#allocation7 + $0x48] sm:$0xff]
    %v194 = vld [vmem:[#allocation7 + $0x50] sm:$0xff]
    %v195 = vld [vmem:[#allocation7 + $0x58] sm:$0xff]
    %v196 = vld [vmem:[#allocation7 + $0x60] sm:$0xff]
    %v197 = vld [vmem:[#allocation7 + $0x68] sm:$0xff]
    %v198 = vld [vmem:[#allocation7 + $0x70] sm:$0xff]
    %v199 = vld [vmem:[#allocation7 + $0x78] sm:$0xff]
    %v200 = vld [vmem:[%s4] sm:$0x1]
    %v202 = vlaneseq
    %v203 = vshrl.u32 %v202, 7
    %v204 = vsub.s32 0, %v203
    %v205 = vrot.slane %v200, %v204
    %207 = vmatprep.subr.mxu0 0.0
    %208 = vmatpush1.msra.mxu0 %v199
    %209 = vmatprep.subr.mxu0 0.0
    %210 = vmatpush1.msra.mxu0 %v198
    %211 = vmatprep.subr.mxu0 0.0
    %212 = vmatpush1.msra.mxu0 %v197
    %213 = vmatprep.subr.mxu0 0.0
    %214 = vmatpush1.msra.mxu0 %v196
    %215 = vmatprep.subr.mxu0 0.0
    %216 = vmatpush1.msra.mxu0 %v195
    %217 = vmatprep.subr.mxu0 0.0
    %218 = vmatpush1.msra.mxu0 %v194
    %219 = vmatprep.subr.mxu0 0.0
    %220 = vmatpush1.msra.mxu0 %v193
    %221 = vmatprep.subr.mxu0 0.0
    %222 = vmatpush1.msra.mxu0 %v192
    %223 = vmatprep.subr.mxu0 0.0
    %224 = vmatpush1.msra.mxu0 %v191
    %225 = vmatprep.subr.mxu0 0.0
    %226 = vmatpush1.msra.mxu0 %v190
    %227 = vmatprep.subr.mxu0 0.0
    %228 = vmatpush1.msra.mxu0 %v189
    %229 = vmatprep.subr.mxu0 0.0
    %230 = vmatpush1.msra.mxu0 %v188
    %231 = vmatprep.subr.mxu0 0.0
    %232 = vmatpush1.msra.mxu0 %v187
    %233 = vmatprep.subr.mxu0 0.0
    %234 = vmatpush1.msra.mxu0 %v186
    %235 = vmatprep.subr.mxu0 0.0
    %236 = vmatpush1.msra.mxu0 %v185
    %237 = vmatprep.subr.mxu0 0.0
    %238 = vmatpush1.msra.mxu0 %v184
    %239 = vmatprep.subr.mxu0 0.0
    %240 = vmatpush2.msra.mxu0 0.0
    %241 = vmatprep.subr.mxu0 0.0
    %242 = vmatpush2.msra.mxu0 0.0
    %243 = vmatprep.subr.mxu0 0.0
    %244 = vmatpush2.msra.mxu0 0.0
    %245 = vmatprep.subr.mxu0 0.0
    %246 = vmatpush2.msra.mxu0 0.0
    %247 = vmatprep.subr.mxu0 0.0
    %248 = vmatpush2.msra.mxu0 0.0
    %249 = vmatprep.subr.mxu0 0.0
    %250 = vmatpush2.msra.mxu0 0.0
    %251 = vmatprep.subr.mxu0 0.0
    %252 = vmatpush2.msra.mxu0 0.0
    %253 = vmatprep.subr.mxu0 0.0
    %254 = vmatpush2.msra.mxu0 0.0
    %255 = vmatprep.subr.mxu0 0.0
    %256 = vmatpush2.msra.mxu0 0.0
    %257 = vmatprep.subr.mxu0 0.0
    %258 = vmatpush2.msra.mxu0 0.0
    %259 = vmatprep.subr.mxu0 0.0
    %260 = vmatpush2.msra.mxu0 0.0
    %261 = vmatprep.subr.mxu0 0.0
    %262 = vmatpush2.msra.mxu0 0.0
    %263 = vmatprep.subr.mxu0 0.0
    %264 = vmatpush2.msra.mxu0 0.0
    %265 = vmatprep.subr.mxu0 0.0
    %266 = vmatpush2.msra.mxu0 0.0
    %267 = vmatprep.subr.mxu0 0.0
    %268 = vmatpush2.msra.mxu0 0.0
    %269 = vmatprep.subr.mxu0 0.0
    %270 = vmatpush2.msra.mxu0 0.0
    %271 = vmatprep.mubr.f32.mxu0 0.0
    %272 = vmatmul.mubr.f32.gmra.mxu0 %v182
    %v273 = vpop.f32.mrf.mxu0
    %v274 = vadd.f32 %v205, %v273
    %v275 = vpop.f32.mrf.mxu0
    %276 = vmatprep.mubr.f32.mxu0 0.0
    %277 = vmatmul.mubr.f32.gmra.mxu0 %v183
    %v278 = vpop.f32.mrf.mxu0
    %v279 = vadd.f32 %v205, %v278
    %v280 = vpop.f32.mrf.mxu0
    %281 = vdwg.mxu0
    %v282 = vmax.f32 %v274, 0.0
    %v283 = vmax.f32 %v279, 0.0
    %v284 = vld [vmem:[#allocation8] sm:$0xff]
    %v285 = vld [vmem:[#allocation8 + $0x8] sm:$0xff]
    %v286 = vld [vmem:[#allocation8 + $0x10] sm:$0xff]
    %v287 = vld [vmem:[#allocation8 + $0x18] sm:$0xff]
    %v288 = vld [vmem:[#allocation8 + $0x20] sm:$0xff]
    %v289 = vld [vmem:[#allocation8 + $0x28] sm:$0xff]
    %v290 = vld [vmem:[#allocation8 + $0x30] sm:$0xff]
    %v291 = vld [vmem:[#allocation8 + $0x38] sm:$0xff]
    %v292 = vld [vmem:[#allocation8 + $0x40] sm:$0xff]
    %v293 = vld [vmem:[#allocation8 + $0x48] sm:$0xff]
    %v294 = vld [vmem:[#allocation8 + $0x50] sm:$0xff]
    %v295 = vld [vmem:[#allocation8 + $0x58] sm:$0xff]
    %v296 = vld [vmem:[#allocation8 + $0x60] sm:$0xff]
    %v297 = vld [vmem:[#allocation8 + $0x68] sm:$0xff]
    %v298 = vld [vmem:[#allocation8 + $0x70] sm:$0xff]
    %v299 = vld [vmem:[#allocation8 + $0x78] sm:$0xff]
    %v300 = vld [vmem:[%s6] sm:$0x1]
    %v302 = vlaneseq
    %v303 = vshrl.u32 %v302, 7
    %v304 = vsub.s32 0, %v303
    %v305 = vrot.slane %v300, %v304
    %307 = vmatprep.subr.mxu0 0.0
    %308 = vmatpush1.msra.mxu0 %v299
    %309 = vmatprep.subr.mxu0 0.0
    %310 = vmatpush1.msra.mxu0 %v298
    %311 = vmatprep.subr.mxu0 0.0
    %312 = vmatpush1.msra.mxu0 %v297
    %313 = vmatprep.subr.mxu0 0.0
    %314 = vmatpush1.msra.mxu0 %v296
    %315 = vmatprep.subr.mxu0 0.0
    %316 = vmatpush1.msra.mxu0 %v295
    %317 = vmatprep.subr.mxu0 0.0
    %318 = vmatpush1.msra.mxu0 %v294
    %319 = vmatprep.subr.mxu0 0.0
    %320 = vmatpush1.msra.mxu0 %v293
    %321 = vmatprep.subr.mxu0 0.0
    %322 = vmatpush1.msra.mxu0 %v292
    %323 = vmatprep.subr.mxu0 0.0
    %324 = vmatpush1.msra.mxu0 %v291
    %325 = vmatprep.subr.mxu0 0.0
    %326 = vmatpush1.msra.mxu0 %v290
    %327 = vmatprep.subr.mxu0 0.0
    %328 = vmatpush1.msra.mxu0 %v289
    %329 = vmatprep.subr.mxu0 0.0
    %330 = vmatpush1.msra.mxu0 %v288
    %331 = vmatprep.subr.mxu0 0.0
    %332 = vmatpush1.msra.mxu0 %v287
    %333 = vmatprep.subr.mxu0 0.0
    %334 = vmatpush1.msra.mxu0 %v286
    %335 = vmatprep.subr.mxu0 0.0
    %336 = vmatpush1.msra.mxu0 %v285
    %337 = vmatprep.subr.mxu0 0.0
    %338 = vmatpush1.msra.mxu0 %v284
    %339 = vmatprep.subr.mxu0 0.0
    %340 = vmatpush2.msra.mxu0 0.0
    %341 = vmatprep.subr.mxu0 0.0
    %342 = vmatpush2.msra.mxu0 0.0
    %343 = vmatprep.subr.mxu0 0.0
    %344 = vmatpush2.msra.mxu0 0.0
    %345 = vmatprep.subr.mxu0 0.0
    %346 = vmatpush2.msra.mxu0 0.0
    %347 = vmatprep.subr.mxu0 0.0
    %348 = vmatpush2.msra.mxu0 0.0
    %349 = vmatprep.subr.mxu0 0.0
    %350 = vmatpush2.msra.mxu0 0.0
    %351 = vmatprep.subr.mxu0 0.0
    %352 = vmatpush2.msra.mxu0 0.0
    %353 = vmatprep.subr.mxu0 0.0
    %354 = vmatpush2.msra.mxu0 0.0
    %355 = vmatprep.subr.mxu0 0.0
    %356 = vmatpush2.msra.mxu0 0.0
    %357 = vmatprep.subr.mxu0 0.0
    %358 = vmatpush2.msra.mxu0 0.0
    %359 = vmatprep.subr.mxu0 0.0
    %360 = vmatpush2.msra.mxu0 0.0
    %361 = vmatprep.subr.mxu0 0.0
    %362 = vmatpush2.msra.mxu0 0.0
    %363 = vmatprep.subr.mxu0 0.0
    %364 = vmatpush2.msra.mxu0 0.0
    %365 = vmatprep.subr.mxu0 0.0
    %366 = vmatpush2.msra.mxu0 0.0
    %367 = vmatprep.subr.mxu0 0.0
    %368 = vmatpush2.msra.mxu0 0.0
    %369 = vmatprep.subr.mxu0 0.0
    %370 = vmatpush2.msra.mxu0 0.0
    %371 = vmatprep.mubr.f32.mxu0 0.0
    %372 = vmatmul.mubr.f32.gmra.mxu0 %v282
    %v373 = vpop.f32.mrf.mxu0
    %v374 = vadd.f32 %v305, %v373
    %v375 = vpop.f32.mrf.mxu0
    %376 = vmatprep.mubr.f32.mxu0 0.0
    %377 = vmatmul.mubr.f32.gmra.mxu0 %v283
    %v378 = vpop.f32.mrf.mxu0
    %v379 = vadd.f32 %v305, %v378
    %v380 = vpop.f32.mrf.mxu0
    %381 = vdwg.mxu0
    %382 = vst [vmem:[#allocation10] sm:$0xff] %v374
    %383 = vst [vmem:[#allocation10 + $0x8] sm:$0xff] %v379
    // Predicated region
    $region46: #{tpu_custom_call.1} parent=1 // pred_check
      _
    $region47: #{tpu_custom_call.1} parent=1 // pred_check_branch
      %385 = sbr.rel (0) target = $region49
    $region48: #{tpu_custom_call.1} parent=1 // pred_region
      %s387 = ssub.s32 256, 256
      %388 = vsyncadd [#allocation4], %s387
      %s389 = sshll.u32 [#allocation10], 4
      %s390 = int_to_ptr.vmem [resolvable:$true] %s389
      %395 = dma.vmem_to_hbm [thread:$0]  %s390, 256, %s7, [#allocation4], 128, 128, 8
    $region49: #{tpu_custom_call.1} parent=1 // pred_fallthru
      _
    // Predicated region
    $region50: #{tpu_custom_call.1} parent=1 // pred_check
      _
    $region51: #{tpu_custom_call.1} parent=1 // pred_check_branch
      %397 = sbr.rel (0) target = $region53
    $region52: #{tpu_custom_call.1} parent=1 // pred_region
      %398 = dma.done [#allocation4], 256
    $region53: #{tpu_custom_call.1} parent=1 // pred_fallthru
      _
    %399 = vsyncpa [#allocation3], 1
    %400 = vsyncpa [#allocation6], 1
    %401 = vsyncpa [#allocation9], 1
    %402 = vsyncpa [#allocation4], 1

</llo_original>
